<compile_context>
chip_gen: v6e
topology: v6e:2x2x1
jax: 0.10.0
libtpu: 0.0.40
codegen_flags: <defaults>
</compile_context>

<pallas_src>
import functools

import jax
import jax.numpy as jnp
from jax.experimental import pallas as pl
from jax.experimental.pallas import tpu as pltpu

_LANE = 128     # vreg lane width
_SUBLANE = 8    # vreg sublane width (f32)


def _round_up(n, m):
    return ((n + m - 1) // m) * m


def _cdiv(a, b):
    return -(-a // b)


def _qnet_kernel(x_ref, w1_ref, b1_ref, w2_ref, b2_ref, o_ref):
    # hidden = relu(x @ W1 + b1)        (K = real state_size, N = h_pad)
    h = jnp.dot(x_ref[...], w1_ref[...], preferred_element_type=jnp.float32)
    h = jnp.maximum(h + b1_ref[...], 0.0)
    # out = hidden @ W2 + b2  -- matmul at lane-dense n_pad, store real cols only
    out = jnp.dot(h, w2_ref[...], preferred_element_type=jnp.float32) + b2_ref[...]
    n_real = o_ref.shape[1]
    o_ref[...] = out[:, :n_real].astype(o_ref.dtype)


def prepare_params(w1, b1, w2, b2):
    """Pad parameters ONCE, outside the per-call hot path.

    w1: [state_size, fc1]   (transposed from PyTorch nn.Linear's [out, in])
    b1: [fc1] or [1, fc1]
    w2: [fc1, action_size]
    b2: [action_size] or [1, action_size]
    Returns (w1p, b1p, w2p, b2p):
      w1p [k_pad, h_pad], b1p [1, h_pad], w2p [h_pad, n_pad], b2p [1, n_pad]
    with k_pad = round_up(state_size, 8) (sublane only, NOT 128) and
    h_pad / n_pad lane-padded to 128.  Zero padding is numerically exact.
    """
    state_size, fc1_units = w1.shape
    action_size = w2.shape[1]
    b1 = jnp.reshape(jnp.asarray(b1, jnp.float32), (1, fc1_units))
    b2 = jnp.reshape(jnp.asarray(b2, jnp.float32), (1, action_size))

    k_pad = _round_up(state_size, _SUBLANE)
    h_pad = _round_up(max(fc1_units, _LANE), _LANE)
    n_pad = _round_up(max(action_size, _LANE), _LANE)

    w1p = jnp.zeros((k_pad, h_pad), jnp.float32).at[:state_size, :fc1_units].set(w1)
    b1p = jnp.zeros((1, h_pad), jnp.float32).at[:, :fc1_units].set(b1)
    w2p = jnp.zeros((h_pad, n_pad), jnp.float32).at[:fc1_units, :action_size].set(w2)
    b2p = jnp.zeros((1, n_pad), jnp.float32).at[:, :action_size].set(b2)
    return w1p, b1p, w2p, b2p


@functools.partial(jax.jit, static_argnames=("action_size", "max_tile_rows"))
def qnetwork_forward(x, w1p, b1p, w2p, b2p, *, action_size, max_tile_rows=2048):
    """x: [B, state_size]; params from prepare_params() -> [B, action_size]."""
    B, state_size = x.shape
    k_pad, h_pad = w1p.shape
    n_pad = w2p.shape[1]

    # --- batch tiling: fewest sublane-aligned tiles; even step count if > 1 ---
    n_steps = max(1, _cdiv(B, max_tile_rows))
    if n_steps > 1 and n_steps % 2 == 1:
        n_steps += 1                      # balanced megacore split on v7x
    tile_rows = _round_up(_cdiv(B, n_steps), _SUBLANE)
    b_pad = n_steps * tile_rows

    # --- pad x only when actually needed (rows to b_pad, cols to k_pad<=+7) ---
    x = x.astype(jnp.float32)
    if (b_pad != B) or (k_pad != state_size):
        xp = jnp.zeros((b_pad, k_pad), jnp.float32).at[:B, :state_size].set(x)
    else:
        xp = x

    out_padded = pl.pallas_call(
        _qnet_kernel,
        out_shape=jax.ShapeDtypeStruct((b_pad, action_size), jnp.float32),
        grid=(n_steps,),
        in_specs=[
            pl.BlockSpec((tile_rows, k_pad), lambda i: (i, 0)),   # x: tiled over batch
            pl.BlockSpec((k_pad, h_pad), lambda i: (0, 0)),       # W1: VMEM-resident
            pl.BlockSpec((1, h_pad), lambda i: (0, 0)),           # b1: resident
            pl.BlockSpec((h_pad, n_pad), lambda i: (0, 0)),       # W2: resident
            pl.BlockSpec((1, n_pad), lambda i: (0, 0)),           # b2: resident
        ],
        out_specs=pl.BlockSpec((tile_rows, action_size), lambda i: (i, 0)),
        compiler_params=pltpu.CompilerParams(
            dimension_semantics=("parallel",),
        ),
    )(xp, w1p, b1p, w2p, b2p)

    return out_padded[:B] if b_pad != B else out_padded


def init_params(key, state_size, action_size, fc1_units=256):
    """Deterministic init mimicking nn.Linear default (uniform +-1/sqrt(fan_in))."""
    k1, k2, k3, k4 = jax.random.split(key, 4)
    lim1 = 1.0 / jnp.sqrt(jnp.float32(state_size))
    lim2 = 1.0 / jnp.sqrt(jnp.float32(fc1_units))
    w1 = jax.random.uniform(k1, (state_size, fc1_units), jnp.float32, -lim1, lim1)
    b1 = jax.random.uniform(k2, (fc1_units,), jnp.float32, -lim1, lim1)
    w2 = jax.random.uniform(k3, (fc1_units, action_size), jnp.float32, -lim2, lim2)
    b2 = jax.random.uniform(k4, (action_size,), jnp.float32, -lim2, lim2)
    return w1, b1, w2, b2


def _reference(x, w1, b1, w2, b2):
    return jnp.maximum(x @ w1 + b1, 0.0) @ w2 + b2


if __name__ == "__main__":
    key = jax.random.PRNGKey(0)
    state_size, action_size, fc1_units = 8, 4, 256
    kx, kp, kb = jax.random.split(key, 3)
    w1, b1, w2, b2 = init_params(kp, state_size, action_size, fc1_units)

    # Pad weights ONCE (outside the hot per-step loop).
    w1p, b1p, w2p, b2p = jax.block_until_ready(prepare_params(w1, b1, w2, b2))

    # Small batch (typical RL act(): single grid step, x feature dim unpadded).
    x_small = jax.random.normal(kx, (2, state_size), jnp.float32)
    out_small = qnetwork_forward(x_small, w1p, b1p, w2p, b2p, action_size=action_size)
    jax.block_until_ready(out_small)
    ref_small = _reference(x_small, w1, b1, w2, b2)
    assert out_small.shape == (2, action_size)
    assert jnp.allclose(out_small, ref_small, atol=1e-5, rtol=1e-5)

    # Mid-size batch: one 1104-row tile (4 junk rows), single grid step.
    x_big = jax.random.normal(kb, (1100, state_size), jnp.float32)
    out_big = qnetwork_forward(x_big, w1p, b1p, w2p, b2p, action_size=action_size)
    jax.block_until_ready(out_big)
    ref_big = _reference(x_big, w1, b1, w2, b2)
    assert out_big.shape == (1100, action_size)
    assert jnp.allclose(out_big, ref_big, atol=1e-4, rtol=1e-4)

    # Large batch exercises the multi-step pipelined path (grid=4, even for v7x).
    x_huge = jax.random.normal(jax.random.fold_in(key, 7), (5000, state_size),
                               jnp.float32)
    out_huge = qnetwork_forward(x_huge, w1p, b1p, w2p, b2p, action_size=action_size)
    jax.block_until_ready(out_huge)
    ref_huge = _reference(x_huge, w1, b1, w2, b2)
    assert out_huge.shape == (5000, action_size)
    assert jnp.allclose(out_huge, ref_huge, atol=1e-4, rtol=1e-4)

    print("KERNEL_OK")
</pallas_src>

<mosaic_0001>
module attributes {stable_mosaic.version = 11 : i64} {
  func.func @_qnet_kernel(%arg0: i32, %arg1: memref<8x8xf32, #tpu.memory_space<vmem>>, %arg2: memref<8x256xf32, #tpu.memory_space<vmem>>, %arg3: memref<1x256xf32, #tpu.memory_space<vmem>>, %arg4: memref<256x128xf32, #tpu.memory_space<vmem>>, %arg5: memref<1x128xf32, #tpu.memory_space<vmem>>, %arg6: memref<8x4xf32, #tpu.memory_space<vmem>>) attributes {dimension_semantics = [#tpu.dimension_semantics<parallel>], iteration_bounds = array<i64: 1>, scalar_prefetch = 0 : i64, scratch_operands = 0 : i64, tpu.core_type = #tpu.core_type<tc>, window_params = [{transform_indices = @transform_0, window_bounds = array<i64: 8, 8>}, {pipeline_mode = #tpu.pipeline_mode<synchronous>, transform_indices = @transform_1, window_bounds = array<i64: 8, 256>}, {pipeline_mode = #tpu.pipeline_mode<synchronous>, transform_indices = @transform_2, window_bounds = array<i64: 1, 256>}, {pipeline_mode = #tpu.pipeline_mode<synchronous>, transform_indices = @transform_3, window_bounds = array<i64: 256, 128>}, {pipeline_mode = #tpu.pipeline_mode<synchronous>, transform_indices = @transform_4, window_bounds = array<i64: 1, 128>}, {transform_indices = @transform_5, window_bounds = array<i64: 8, 4>}]} {
    %c0 = arith.constant 0 : index
    %c0_0 = arith.constant 0 : index
    %0 = vector.load %arg1[%c0, %c0_0] : memref<8x8xf32, #tpu.memory_space<vmem>>, vector<8x8xf32>
    %c0_1 = arith.constant 0 : index
    %c0_2 = arith.constant 0 : index
    %1 = vector.load %arg2[%c0_1, %c0_2] : memref<8x256xf32, #tpu.memory_space<vmem>>, vector<8x256xf32>
    %cst = arith.constant dense<0.000000e+00> : vector<8x256xf32>
    %2 = tpu.matmul %0, %1, %cst {dimension_numbers = #tpu.dot_dimension_numbers<[1], [0], [0], [1], [0, 0, 1, 1], [], []>} : vector<8x8xf32>, vector<8x256xf32>, vector<8x256xf32> -> vector<8x256xf32>
    %c0_3 = arith.constant 0 : index
    %c0_4 = arith.constant 0 : index
    %3 = vector.load %arg3[%c0_3, %c0_4] : memref<1x256xf32, #tpu.memory_space<vmem>>, vector<1x256xf32>
    %4 = vector.broadcast %3 : vector<1x256xf32> to vector<8x256xf32>
    %5 = arith.addf %2, %4 : vector<8x256xf32>
    %cst_5 = arith.constant 0.000000e+00 : f32
    %6 = vector.broadcast %cst_5 : f32 to vector<8x256xf32>
    %7 = arith.maximumf %5, %6 : vector<8x256xf32>
    %c0_6 = arith.constant 0 : index
    %c0_7 = arith.constant 0 : index
    %8 = vector.load %arg4[%c0_6, %c0_7] : memref<256x128xf32, #tpu.memory_space<vmem>>, vector<256x128xf32>
    %cst_8 = arith.constant dense<0.000000e+00> : vector<8x128xf32>
    %9 = tpu.matmul %7, %8, %cst_8 {dimension_numbers = #tpu.dot_dimension_numbers<[1], [0], [0], [1], [0, 0, 1, 1], [], []>} : vector<8x256xf32>, vector<256x128xf32>, vector<8x128xf32> -> vector<8x128xf32>
    %c0_9 = arith.constant 0 : index
    %c0_10 = arith.constant 0 : index
    %10 = vector.load %arg5[%c0_9, %c0_10] : memref<1x128xf32, #tpu.memory_space<vmem>>, vector<1x128xf32>
    %11 = vector.broadcast %10 : vector<1x128xf32> to vector<8x128xf32>
    %12 = arith.addf %9, %11 : vector<8x128xf32>
    %13 = vector.extract_strided_slice %12 {offsets = [0, 0], sizes = [8, 4], strides = [1, 1]} : vector<8x128xf32> to vector<8x4xf32>
    %c0_11 = arith.constant 0 : index
    %c0_12 = arith.constant 0 : index
    %14 = vector.load %arg6[%c0_11, %c0_12] : memref<8x4xf32, #tpu.memory_space<vmem>>, vector<8x4xf32>
    tpu.vector_store %arg6[%c0_11, %c0_12], %13 {strides = array<i32>} : memref<8x4xf32, #tpu.memory_space<vmem>>, vector<8x4xf32>,
    return
  }
  func.func @transform_0(%arg0: i32) -> (i32, i32) {
    %c0_i32 = arith.constant 0 : i32
    %c0_i32_0 = arith.constant 0 : i32
    return %arg0, %c0_i32 : i32, i32
  }
  func.func @transform_1(%arg0: i32) -> (i32, i32) {
    %c0_i32 = arith.constant 0 : i32
    %c0_i32_0 = arith.constant 0 : i32
    %c0_i32_1 = arith.constant 0 : i32
    return %c0_i32, %c0_i32_0 : i32, i32
  }
  func.func @transform_2(%arg0: i32) -> (i32, i32) {
    %c0_i32 = arith.constant 0 : i32
    %c0_i32_0 = arith.constant 0 : i32
    %c0_i32_1 = arith.constant 0 : i32
    return %c0_i32, %c0_i32_0 : i32, i32
  }
  func.func @transform_3(%arg0: i32) -> (i32, i32) {
    %c0_i32 = arith.constant 0 : i32
    %c0_i32_0 = arith.constant 0 : i32
    %c0_i32_1 = arith.constant 0 : i32
    return %c0_i32, %c0_i32_0 : i32, i32
  }
  func.func @transform_4(%arg0: i32) -> (i32, i32) {
    %c0_i32 = arith.constant 0 : i32
    %c0_i32_0 = arith.constant 0 : i32
    %c0_i32_1 = arith.constant 0 : i32
    return %c0_i32, %c0_i32_0 : i32, i32
  }
  func.func @transform_5(%arg0: i32) -> (i32, i32) {
    %c0_i32 = arith.constant 0 : i32
    %c0_i32_0 = arith.constant 0 : i32
    return %arg0, %c0_i32 : i32, i32
  }
}

</mosaic_0001>

<llo_original>
// kernel: qnetwork_forward.1
$region0: #{qnetwork_forward.1}
  #allocation0 [shape = 'u32[]', space=smem, size = 0x4, offset = 0x4, fixed_abs, tag = 'smem constant byte address 0x4 - core index']
  #allocation1 [shape = 'u32[144,128]{1,0:T(1,128)}', space=vmem, size = 0x12000, scoped, tag = 'internal scratch']
  %s0 = inlined_call_operand.vmem [shape: f32[8,8], index: 0, kind: input, shape index: {}]
  %s1 = inlined_call_operand.hbm [shape: f32[8,256], index: 1, kind: input, shape index: {}]
  %s2 = inlined_call_operand.vmem [shape: f32[1,256], index: 2, kind: input, shape index: {}]
  %s3 = inlined_call_operand.hbm [shape: f32[256,128], index: 3, kind: input, shape index: {}]
  %s4 = inlined_call_operand.vmem [shape: f32[1,128], index: 4, kind: input, shape index: {}]
  %s5 = inlined_call_operand.vmem [shape: f32[8,4], index: 5, kind: output, shape index: {}]
  %s6 = sld [smem:[#allocation0]]
  $region38: #{qnetwork_forward.1} parent=0
    _
  %s8 = ssub.s32 1, %s6
  %s9 = scalar_select 0, %s8, %s6
  $region1: #{qnetwork_forward.1} parent=0
    #allocation2 [shape = 'u8[8192]{0}', space=vmem, size = 0x2000, scoped, tag = 'input window, operand 1, single buffered']
    #allocation3 [shape = 's32[1]{0}', space=sflag, size = 0x4, scoped, tag = 'scoped memory for qnetwork_forward.1']
    #allocation4 [shape = 'u8[131072]{0}', space=vmem, size = 0x20000, scoped, tag = 'input window, operand 3, single buffered']
    #allocation5 [shape = 's32[1]{0}', space=sflag, size = 0x4, scoped, tag = 'scoped memory for qnetwork_forward.1']
    %10 = vsyncpa [#allocation3], 0
    %11 = vsyncpa [#allocation5], 0
    // Predicated region
    $region2: #{qnetwork_forward.1} parent=1 // pred_check
      _
    $region3: #{qnetwork_forward.1} parent=1 // pred_check_branch
      %13 = sbr.rel (0) target = $region5
    $region4: #{qnetwork_forward.1} parent=1 // pred_region
      _
    $region5: #{qnetwork_forward.1} parent=1 // pred_fallthru
      _
    // Predicated region
    $region6: #{qnetwork_forward.1} parent=1 // pred_check
      _
    $region7: #{qnetwork_forward.1} parent=1 // pred_check_branch
      %15 = sbr.rel (0) target = $region9
    $region8: #{qnetwork_forward.1} parent=1 // pred_region
      %s17 = ssub.s32 256, 256
      %18 = vsyncadd [#allocation3], %s17
      %s20 = sshll.u32 [#allocation2], 4
      %s21 = int_to_ptr.vmem [resolvable:$true] %s20
      %23 = dma.hbm_to_vmem [thread:$0]  %s1, 256, %s21, [#allocation3]
    $region9: #{qnetwork_forward.1} parent=1 // pred_fallthru
      _
    // Predicated region
    $region10: #{qnetwork_forward.1} parent=1 // pred_check
      _
    $region11: #{qnetwork_forward.1} parent=1 // pred_check_branch
      %25 = sbr.rel (0) target = $region13
    $region12: #{qnetwork_forward.1} parent=1 // pred_region
      _
    $region13: #{qnetwork_forward.1} parent=1 // pred_fallthru
      _
    // Predicated region
    $region14: #{qnetwork_forward.1} parent=1 // pred_check
      _
    $region15: #{qnetwork_forward.1} parent=1 // pred_check_branch
      %27 = sbr.rel (0) target = $region17
    $region16: #{qnetwork_forward.1} parent=1 // pred_region
      %s29 = ssub.s32 4096, 4096
      %30 = vsyncadd [#allocation5], %s29
      %s31 = sshll.u32 [#allocation4], 4
      %s32 = int_to_ptr.vmem [resolvable:$true] %s31
      %37 = dma.hbm_to_vmem [thread:$0]  %s3, 4096, %s32, [#allocation5], 128, 128, 8
    $region17: #{qnetwork_forward.1} parent=1 // pred_fallthru
      _
    // Predicated region
    $region18: #{qnetwork_forward.1} parent=1 // pred_check
      _
    $region19: #{qnetwork_forward.1} parent=1 // pred_check_branch
      %39 = sbr.rel (0) target = $region21
    $region20: #{qnetwork_forward.1} parent=1 // pred_region
      _
    $region21: #{qnetwork_forward.1} parent=1 // pred_fallthru
      _
    // Predicated region
    $region22: #{qnetwork_forward.1} parent=1 // pred_check
      _
    $region23: #{qnetwork_forward.1} parent=1 // pred_check_branch
      %41 = sbr.rel (0) target = $region25
    $region24: #{qnetwork_forward.1} parent=1 // pred_region
      %42 = dma.done [#allocation3], 256
    $region25: #{qnetwork_forward.1} parent=1 // pred_fallthru
      _
    // Predicated region
    $region26: #{qnetwork_forward.1} parent=1 // pred_check
      _
    $region27: #{qnetwork_forward.1} parent=1 // pred_check_branch
      %44 = sbr.rel (0) target = $region29
    $region28: #{qnetwork_forward.1} parent=1 // pred_region
      %45 = dma.done [#allocation5], 4096
    $region29: #{qnetwork_forward.1} parent=1 // pred_fallthru
      _
    %v46 = vld [vmem:[%s0] sm:$0xff]
    %v47 = vld [vmem:[#allocation2] sm:$0xff]
    %v48 = vld [vmem:[#allocation2 + $0x8] sm:$0xff]
    %v49 = vld [vmem:[%s2] sm:$0x3]
    %v51 = vlaneseq
    %v52 = vshrl.u32 %v51, 7
    %v53 = vsub.s32 0, %v52
    %v54 = vrot.slane %v49, %v53
    %v55 = vlaneseq
    %v56 = vshrl.u32 %v55, 7
    %v57 = vsub.s32 1, %v56
    %v58 = vrot.slane %v49, %v57
    %vm61 = vcmask 64512
    %v63 = vsel %vm61, %v46, 0
    %65 = vmatprep.subr.mxu0 0.0
    %66 = vmatpush1.msra.mxu0 0.0
    %67 = vmatprep.subr.mxu0 0.0
    %68 = vmatpush1.msra.mxu0 0.0
    %69 = vmatprep.subr.mxu0 0.0
    %70 = vmatpush1.msra.mxu0 0.0
    %71 = vmatprep.subr.mxu0 0.0
    %72 = vmatpush1.msra.mxu0 0.0
    %73 = vmatprep.subr.mxu0 0.0
    %74 = vmatpush1.msra.mxu0 0.0
    %75 = vmatprep.subr.mxu0 0.0
    %76 = vmatpush1.msra.mxu0 0.0
    %77 = vmatprep.subr.mxu0 0.0
    %78 = vmatpush1.msra.mxu0 0.0
    %79 = vmatprep.subr.mxu0 0.0
    %80 = vmatpush1.msra.mxu0 0.0
    %81 = vmatprep.subr.mxu0 0.0
    %82 = vmatpush1.msra.mxu0 0.0
    %83 = vmatprep.subr.mxu0 0.0
    %84 = vmatpush1.msra.mxu0 0.0
    %85 = vmatprep.subr.mxu0 0.0
    %86 = vmatpush1.msra.mxu0 0.0
    %87 = vmatprep.subr.mxu0 0.0
    %88 = vmatpush1.msra.mxu0 0.0
    %89 = vmatprep.subr.mxu0 0.0
    %90 = vmatpush1.msra.mxu0 0.0
    %91 = vmatprep.subr.mxu0 0.0
    %92 = vmatpush1.msra.mxu0 0.0
    %93 = vmatprep.subr.mxu0 0.0
    %94 = vmatpush1.msra.mxu0 0.0
    %95 = vmatprep.subr.mxu0 %v48
    %96 = vmatpush1.msra.mxu0 %v47
    %97 = vmatprep.subr.mxu0 0.0
    %98 = vmatpush2.msra.mxu0 0.0
    %99 = vmatprep.subr.mxu0 0.0
    %100 = vmatpush2.msra.mxu0 0.0
    %101 = vmatprep.subr.mxu0 0.0
    %102 = vmatpush2.msra.mxu0 0.0
    %103 = vmatprep.subr.mxu0 0.0
    %104 = vmatpush2.msra.mxu0 0.0
    %105 = vmatprep.subr.mxu0 0.0
    %106 = vmatpush2.msra.mxu0 0.0
    %107 = vmatprep.subr.mxu0 0.0
    %108 = vmatpush2.msra.mxu0 0.0
    %109 = vmatprep.subr.mxu0 0.0
    %110 = vmatpush2.msra.mxu0 0.0
    %111 = vmatprep.subr.mxu0 0.0
    %112 = vmatpush2.msra.mxu0 0.0
    %113 = vmatprep.subr.mxu0 0.0
    %114 = vmatpush2.msra.mxu0 0.0
    %115 = vmatprep.subr.mxu0 0.0
    %116 = vmatpush2.msra.mxu0 0.0
    %117 = vmatprep.subr.mxu0 0.0
    %118 = vmatpush2.msra.mxu0 0.0
    %119 = vmatprep.subr.mxu0 0.0
    %120 = vmatpush2.msra.mxu0 0.0
    %121 = vmatprep.subr.mxu0 0.0
    %122 = vmatpush2.msra.mxu0 0.0
    %123 = vmatprep.subr.mxu0 0.0
    %124 = vmatpush2.msra.mxu0 0.0
    %125 = vmatprep.subr.mxu0 0.0
    %126 = vmatpush2.msra.mxu0 0.0
    %127 = vmatprep.subr.mxu0 0.0
    %128 = vmatpush2.msra.mxu0 0.0
    %129 = vmatprep.mubr.f32.mxu0 0.0
    %130 = vmatmul.mubr.f32.gmra.mxu0 %v63
    %v131 = vpop.f32.mrf.mxu0
    %v132 = vadd.f32 %v54, %v131
    %v133 = vpop.f32.mrf.mxu0
    %v134 = vadd.f32 %v58, %v133
    %135 = vdwg.mxu0
    %v136 = vmax.f32 %v132, 0.0
    %v137 = vmax.f32 %v134, 0.0
    %v138 = vld [vmem:[#allocation4] sm:$0xff]
    %v139 = vld [vmem:[#allocation4 + $0x8] sm:$0xff]
    %v140 = vld [vmem:[#allocation4 + $0x10] sm:$0xff]
    %v141 = vld [vmem:[#allocation4 + $0x18] sm:$0xff]
    %v142 = vld [vmem:[#allocation4 + $0x20] sm:$0xff]
    %v143 = vld [vmem:[#allocation4 + $0x28] sm:$0xff]
    %v144 = vld [vmem:[#allocation4 + $0x30] sm:$0xff]
    %v145 = vld [vmem:[#allocation4 + $0x38] sm:$0xff]
    %v146 = vld [vmem:[#allocation4 + $0x40] sm:$0xff]
    %v147 = vld [vmem:[#allocation4 + $0x48] sm:$0xff]
    %v148 = vld [vmem:[#allocation4 + $0x50] sm:$0xff]
    %v149 = vld [vmem:[#allocation4 + $0x58] sm:$0xff]
    %v150 = vld [vmem:[#allocation4 + $0x60] sm:$0xff]
    %v151 = vld [vmem:[#allocation4 + $0x68] sm:$0xff]
    %v152 = vld [vmem:[#allocation4 + $0x70] sm:$0xff]
    %v153 = vld [vmem:[#allocation4 + $0x78] sm:$0xff]
    %v154 = vld [vmem:[#allocation4 + $0x80] sm:$0xff]
    %v155 = vld [vmem:[#allocation4 + $0x88] sm:$0xff]
    %v156 = vld [vmem:[#allocation4 + $0x90] sm:$0xff]
    %v157 = vld [vmem:[#allocation4 + $0x98] sm:$0xff]
    %v158 = vld [vmem:[#allocation4 + $0xa0] sm:$0xff]
    %v159 = vld [vmem:[#allocation4 + $0xa8] sm:$0xff]
    %v160 = vld [vmem:[#allocation4 + $0xb0] sm:$0xff]
    %v161 = vld [vmem:[#allocation4 + $0xb8] sm:$0xff]
    %v162 = vld [vmem:[#allocation4 + $0xc0] sm:$0xff]
    %v163 = vld [vmem:[#allocation4 + $0xc8] sm:$0xff]
    %v164 = vld [vmem:[#allocation4 + $0xd0] sm:$0xff]
    %v165 = vld [vmem:[#allocation4 + $0xd8] sm:$0xff]
    %v166 = vld [vmem:[#allocation4 + $0xe0] sm:$0xff]
    %v167 = vld [vmem:[#allocation4 + $0xe8] sm:$0xff]
    %v168 = vld [vmem:[#allocation4 + $0xf0] sm:$0xff]
    %v169 = vld [vmem:[#allocation4 + $0xf8] sm:$0xff]
    %v170 = vld [vmem:[%s4] sm:$0x1]
    %v172 = vlaneseq
    %v173 = vshrl.u32 %v172, 7
    %v174 = vsub.s32 0, %v173
    %v175 = vrot.slane %v170, %v174
    %177 = vmatprep.subr.mxu0 0.0
    %178 = vmatpush1.msra.mxu0 %v153
    %179 = vmatprep.subr.mxu0 0.0
    %180 = vmatpush1.msra.mxu0 %v152
    %181 = vmatprep.subr.mxu0 0.0
    %182 = vmatpush1.msra.mxu0 %v151
    %183 = vmatprep.subr.mxu0 0.0
    %184 = vmatpush1.msra.mxu0 %v150
    %185 = vmatprep.subr.mxu0 0.0
    %186 = vmatpush1.msra.mxu0 %v149
    %187 = vmatprep.subr.mxu0 0.0
    %188 = vmatpush1.msra.mxu0 %v148
    %189 = vmatprep.subr.mxu0 0.0
    %190 = vmatpush1.msra.mxu0 %v147
    %191 = vmatprep.subr.mxu0 0.0
    %192 = vmatpush1.msra.mxu0 %v146
    %193 = vmatprep.subr.mxu0 0.0
    %194 = vmatpush1.msra.mxu0 %v145
    %195 = vmatprep.subr.mxu0 0.0
    %196 = vmatpush1.msra.mxu0 %v144
    %197 = vmatprep.subr.mxu0 0.0
    %198 = vmatpush1.msra.mxu0 %v143
    %199 = vmatprep.subr.mxu0 0.0
    %200 = vmatpush1.msra.mxu0 %v142
    %201 = vmatprep.subr.mxu0 0.0
    %202 = vmatpush1.msra.mxu0 %v141
    %203 = vmatprep.subr.mxu0 0.0
    %204 = vmatpush1.msra.mxu0 %v140
    %205 = vmatprep.subr.mxu0 0.0
    %206 = vmatpush1.msra.mxu0 %v139
    %207 = vmatprep.subr.mxu0 0.0
    %208 = vmatpush1.msra.mxu0 %v138
    %209 = vmatprep.subr.mxu0 0.0
    %210 = vmatpush2.msra.mxu0 %v169
    %211 = vmatprep.subr.mxu0 0.0
    %212 = vmatpush2.msra.mxu0 %v168
    %213 = vmatprep.subr.mxu0 0.0
    %214 = vmatpush2.msra.mxu0 %v167
    %215 = vmatprep.subr.mxu0 0.0
    %216 = vmatpush2.msra.mxu0 %v166
    %217 = vmatprep.subr.mxu0 0.0
    %218 = vmatpush2.msra.mxu0 %v165
    %219 = vmatprep.subr.mxu0 0.0
    %220 = vmatpush2.msra.mxu0 %v164
    %221 = vmatprep.subr.mxu0 0.0
    %222 = vmatpush2.msra.mxu0 %v163
    %223 = vmatprep.subr.mxu0 0.0
    %224 = vmatpush2.msra.mxu0 %v162
    %225 = vmatprep.subr.mxu0 0.0
    %226 = vmatpush2.msra.mxu0 %v161
    %227 = vmatprep.subr.mxu0 0.0
    %228 = vmatpush2.msra.mxu0 %v160
    %229 = vmatprep.subr.mxu0 0.0
    %230 = vmatpush2.msra.mxu0 %v159
    %231 = vmatprep.subr.mxu0 0.0
    %232 = vmatpush2.msra.mxu0 %v158
    %233 = vmatprep.subr.mxu0 0.0
    %234 = vmatpush2.msra.mxu0 %v157
    %235 = vmatprep.subr.mxu0 0.0
    %236 = vmatpush2.msra.mxu0 %v156
    %237 = vmatprep.subr.mxu0 0.0
    %238 = vmatpush2.msra.mxu0 %v155
    %239 = vmatprep.subr.mxu0 0.0
    %240 = vmatpush2.msra.mxu0 %v154
    %241 = vmatprep.mubr.f32.mxu0 %v137
    %242 = vmatmul.mubr.f32.gmra.mxu0 %v136
    %v243 = vpop.f32.mrf.mxu0
    %v244 = vadd.f32 %v175, %v243
    %v245 = vpop.f32.mrf.mxu0
    %246 = vdwg.mxu0
    %vm247 = vcmask 31744
    %248 = vst.msk [vmem:[%s5] sm:$0xff] %vm247, %v244
    // Predicated region
    $region30: #{qnetwork_forward.1} parent=1 // pred_check
      _
    $region31: #{qnetwork_forward.1} parent=1 // pred_check_branch
      %250 = sbr.rel (0) target = $region33
    $region32: #{qnetwork_forward.1} parent=1 // pred_region
      _
    $region33: #{qnetwork_forward.1} parent=1 // pred_fallthru
      _
    // Predicated region
    $region34: #{qnetwork_forward.1} parent=1 // pred_check
      _
    $region35: #{qnetwork_forward.1} parent=1 // pred_check_branch
      %252 = sbr.rel (0) target = $region37
    $region36: #{qnetwork_forward.1} parent=1 // pred_region
      _
    $region37: #{qnetwork_forward.1} parent=1 // pred_fallthru
      _
    %253 = vsyncpa [#allocation3], 1
    %254 = vsyncpa [#allocation5], 1

</llo_original>
